<compile_context>
chip_gen: v7x
topology: tpu7x:2x2x1
jax: 0.10.0
libtpu: 0.0.40
codegen_flags: <defaults>
</compile_context>

<pallas_src>
import jax
import jax.numpy as jnp
import numpy as np
from jax.experimental import pallas as pl
from jax.experimental.pallas import tpu as pltpu


def _spatial_attention_kernel(w_ref, b_ref, x_ref, attended_ref, attn_ref):
    # w_ref: SMEM (C,) f32      -- conv3d 1x1x1 weight, squeezed
    # b_ref: SMEM (1,) f32      -- conv3d bias
    # x_ref:        (1, C, rows_tile, 128)  input dtype
    # attended_ref: (1, C, rows_tile, 128)  input dtype
    # attn_ref:     (1,    rows_tile, 128)  input dtype
    C = x_ref.shape[1]

    x = x_ref[0]                        # (C, rows_tile, 128)
    xf = x.astype(jnp.float32)

    # 1x1x1 conv over channels == scalar-weighted sum of channel planes (VPU).
    acc = xf[0] * w_ref[0]
    for c in range(1, C):               # C is small & static -> unrolled adds
        acc = acc + xf[c] * w_ref[c]

    attn = jax.nn.sigmoid(acc + b_ref[0])            # (rows_tile, 128) f32

    attn_ref[0] = attn.astype(attn_ref.dtype)
    attended_ref[0] = (xf * attn[None]).astype(attended_ref.dtype)


def _pick_rows_tile(rows, C, itemsize, vmem_budget_bytes=12 * 1024 * 1024):
    """Largest rows-tile keeping double-buffered VMEM footprint under budget."""
    # resident ~= 2 * (x block + attended block + attn block)
    per_row = 2 * 128 * itemsize * (2 * C + 1)
    max_rows = max(1, vmem_budget_bytes // per_row)
    if rows <= max_rows:
        return rows                      # full extent along rows (always legal)
    cand = (min(rows, max_rows) // 8) * 8
    while cand >= 8:
        if rows % cand == 0:             # must evenly divide & be multiple of 8
            return cand
        cand -= 8
    # No suitable divisor: fall back to full extent (legal, may be large).
    return rows


def spatial_attention(x_ncdhw, weight, bias, *, vmem_budget_bytes=12 * 1024 * 1024):
    """x_ncdhw: (B, C, D, H, W); weight: (1, C, 1, 1, 1); bias: (1,)."""
    B, C, D, H, W = x_ncdhw.shape
    S = D * H * W
    assert S % 128 == 0, "flattened spatial size must be a multiple of 128"
    rows = S // 128

    dtype = x_ncdhw.dtype
    itemsize = jnp.dtype(dtype).itemsize
    rows_tile = _pick_rows_tile(rows, C, itemsize, vmem_budget_bytes)

    x = x_ncdhw.reshape(B, C, rows, 128)          # lane-dense layout
    w = weight.reshape(C).astype(jnp.float32)     # SMEM scalars
    b = bias.reshape(1).astype(jnp.float32)

    grid = (B, rows // rows_tile)

    attended, attn = pl.pallas_call(
        _spatial_attention_kernel,
        out_shape=(
            jax.ShapeDtypeStruct((B, C, rows, 128), dtype),   # attended features
            jax.ShapeDtypeStruct((B, rows, 128), dtype),      # attention weights
        ),
        grid_spec=pltpu.PrefetchScalarGridSpec(
            num_scalar_prefetch=2,                # weight + bias -> SMEM
            grid=grid,
            in_specs=[
                pl.BlockSpec((1, C, rows_tile, 128),
                             lambda bi, ri, w_, b_: (bi, 0, ri, 0)),
            ],
            out_specs=[
                pl.BlockSpec((1, C, rows_tile, 128),
                             lambda bi, ri, w_, b_: (bi, 0, ri, 0)),
                pl.BlockSpec((1, rows_tile, 128),
                             lambda bi, ri, w_, b_: (bi, ri, 0)),
            ],
        ),
        compiler_params=pltpu.CompilerParams(
            dimension_semantics=("parallel", "parallel"),
            vmem_limit_bytes=32 << 20,            # safe on v5e/v6e/v7x
        ),
    )(w, b, x)

    attended = attended.reshape(B, C, D, H, W)
    attn = attn.reshape(B, 1, D, H, W)
    return attended, attn


def _reference(x, weight, bias):
    # pure-JAX reference of the PyTorch forward (1x1x1 conv3d + sigmoid + gate)
    w = weight.reshape(1, -1, 1, 1, 1).astype(jnp.float32)
    logits = jnp.sum(x.astype(jnp.float32) * w, axis=1, keepdims=True) \
        + bias.reshape(1, 1, 1, 1, 1).astype(jnp.float32)
    attn = jax.nn.sigmoid(logits)
    attended = (x.astype(jnp.float32) * attn).astype(x.dtype)
    return attended, attn.astype(x.dtype)


if __name__ == "__main__":
    key = jax.random.PRNGKey(0)
    k_x, k_w, k_b = jax.random.split(key, 3)

    B, C, D, H, W = 2, 4, 4, 8, 8          # S = 256 -> rows = 2 lane-rows of 128
    x = jax.random.normal(k_x, (B, C, D, H, W), dtype=jnp.float32)

    # Deterministic parameter init (Conv3d(in_channels=C, out_channels=1, k=1)):
    #   weight: (1, C, 1, 1, 1), bias: (1,)
    fan_in = C  # kernel volume = 1
    bound = 1.0 / np.sqrt(fan_in)
    weight = jax.random.uniform(k_w, (1, C, 1, 1, 1), jnp.float32, -bound, bound)
    bias = jax.random.uniform(k_b, (1,), jnp.float32, -bound, bound)

    attended, attn = spatial_attention(x, weight, bias)
    attended = jax.block_until_ready(attended)
    attn = jax.block_until_ready(attn)

    ref_attended, ref_attn = _reference(x, weight, bias)
    assert attended.shape == (B, C, D, H, W)
    assert attn.shape == (B, 1, D, H, W)
    np.testing.assert_allclose(np.asarray(attended), np.asarray(ref_attended),
                               rtol=1e-5, atol=1e-5)
    np.testing.assert_allclose(np.asarray(attn), np.asarray(ref_attn),
                               rtol=1e-5, atol=1e-5)

    print("KERNEL_OK")
</pallas_src>

<mosaic_0001>
module attributes {stable_mosaic.version = 11 : i64} {
  func.func @_spatial_attention_kernel(%arg0: i32, %arg1: i32, %arg2: memref<4xf32, #tpu.memory_space<smem>>, %arg3: memref<1xf32, #tpu.memory_space<smem>>, %arg4: memref<1x4x2x128xf32, #tpu.memory_space<vmem>>, %arg5: memref<1x4x2x128xf32, #tpu.memory_space<vmem>>, %arg6: memref<1x2x128xf32, #tpu.memory_space<vmem>>) attributes {dimension_semantics = [#tpu.dimension_semantics<parallel>, #tpu.dimension_semantics<parallel>], iteration_bounds = array<i64: 2, 1>, scalar_prefetch = 2 : i64, scratch_operands = 0 : i64, tpu.core_type = #tpu.core_type<tc>, window_params = [{transform_indices = @transform_0, window_bounds = array<i64: 1, 4, 2, 128>}, {transform_indices = @transform_1, window_bounds = array<i64: 1, 4, 2, 128>}, {transform_indices = @transform_2, window_bounds = array<i64: 1, 2, 128>}]} {
    %c0 = arith.constant 0 : index
    %c0_0 = arith.constant 0 : index
    %c0_1 = arith.constant 0 : index
    %c0_2 = arith.constant 0 : index
    %0 = vector.load %arg4[%c0, %c0_0, %c0_1, %c0_2] : memref<1x4x2x128xf32, #tpu.memory_space<vmem>>, vector<1x4x2x128xf32>
    %1 = vector.shape_cast %0 : vector<1x4x2x128xf32> to vector<4x2x128xf32>
    %2 = vector.extract_strided_slice %1 {offsets = [0, 0, 0], sizes = [1, 2, 128], strides = [1, 1, 1]} : vector<4x2x128xf32> to vector<1x2x128xf32>
    %3 = vector.shape_cast %2 : vector<1x2x128xf32> to vector<2x128xf32>
    %c0_3 = arith.constant 0 : index
    %4 = memref.load %arg2[%c0_3] : memref<4xf32, #tpu.memory_space<smem>>
    %5 = vector.broadcast %4 : f32 to vector<2x128xf32>
    %6 = arith.mulf %3, %5 : vector<2x128xf32>
    %7 = vector.extract_strided_slice %1 {offsets = [1, 0, 0], sizes = [1, 2, 128], strides = [1, 1, 1]} : vector<4x2x128xf32> to vector<1x2x128xf32>
    %8 = vector.shape_cast %7 : vector<1x2x128xf32> to vector<2x128xf32>
    %c1 = arith.constant 1 : index
    %9 = memref.load %arg2[%c1] : memref<4xf32, #tpu.memory_space<smem>>
    %10 = vector.broadcast %9 : f32 to vector<2x128xf32>
    %11 = arith.mulf %8, %10 : vector<2x128xf32>
    %12 = arith.addf %6, %11 : vector<2x128xf32>
    %13 = vector.extract_strided_slice %1 {offsets = [2, 0, 0], sizes = [1, 2, 128], strides = [1, 1, 1]} : vector<4x2x128xf32> to vector<1x2x128xf32>
    %14 = vector.shape_cast %13 : vector<1x2x128xf32> to vector<2x128xf32>
    %c2 = arith.constant 2 : index
    %15 = memref.load %arg2[%c2] : memref<4xf32, #tpu.memory_space<smem>>
    %16 = vector.broadcast %15 : f32 to vector<2x128xf32>
    %17 = arith.mulf %14, %16 : vector<2x128xf32>
    %18 = arith.addf %12, %17 : vector<2x128xf32>
    %19 = vector.extract_strided_slice %1 {offsets = [3, 0, 0], sizes = [1, 2, 128], strides = [1, 1, 1]} : vector<4x2x128xf32> to vector<1x2x128xf32>
    %20 = vector.shape_cast %19 : vector<1x2x128xf32> to vector<2x128xf32>
    %c3 = arith.constant 3 : index
    %21 = memref.load %arg2[%c3] : memref<4xf32, #tpu.memory_space<smem>>
    %22 = vector.broadcast %21 : f32 to vector<2x128xf32>
    %23 = arith.mulf %20, %22 : vector<2x128xf32>
    %24 = arith.addf %18, %23 : vector<2x128xf32>
    %c0_4 = arith.constant 0 : index
    %25 = memref.load %arg3[%c0_4] : memref<1xf32, #tpu.memory_space<smem>>
    %26 = vector.broadcast %25 : f32 to vector<2x128xf32>
    %27 = arith.addf %24, %26 : vector<2x128xf32>
    %28 = arith.negf %27 : vector<2x128xf32>
    %29 = math.exp %28 : vector<2x128xf32>
    %cst = arith.constant 1.000000e+00 : f32
    %30 = vector.broadcast %cst : f32 to vector<2x128xf32>
    %31 = arith.addf %30, %29 : vector<2x128xf32>
    %32 = arith.divf %30, %31 : vector<2x128xf32>
    %c0_5 = arith.constant 0 : index
    %c0_6 = arith.constant 0 : index
    %c0_7 = arith.constant 0 : index
    %33 = vector.load %arg6[%c0_5, %c0_6, %c0_7] : memref<1x2x128xf32, #tpu.memory_space<vmem>>, vector<1x2x128xf32>
    %34 = vector.shape_cast %33 : vector<1x2x128xf32> to vector<2x128xf32>
    %35 = vector.shape_cast %32 : vector<2x128xf32> to vector<1x2x128xf32>
    tpu.vector_store %arg6[%c0_5, %c0_6, %c0_7], %35 {strides = array<i32>} : memref<1x2x128xf32, #tpu.memory_space<vmem>>, vector<1x2x128xf32>,
    %36 = vector.shape_cast %32 : vector<2x128xf32> to vector<1x2x128xf32>
    %37 = vector.broadcast %36 : vector<1x2x128xf32> to vector<4x2x128xf32>
    %38 = arith.mulf %1, %37 : vector<4x2x128xf32>
    %c0_8 = arith.constant 0 : index
    %c0_9 = arith.constant 0 : index
    %c0_10 = arith.constant 0 : index
    %c0_11 = arith.constant 0 : index
    %39 = vector.load %arg5[%c0_8, %c0_9, %c0_10, %c0_11] : memref<1x4x2x128xf32, #tpu.memory_space<vmem>>, vector<1x4x2x128xf32>
    %40 = vector.shape_cast %39 : vector<1x4x2x128xf32> to vector<4x2x128xf32>
    %41 = vector.shape_cast %38 : vector<4x2x128xf32> to vector<1x4x2x128xf32>
    tpu.vector_store %arg5[%c0_8, %c0_9, %c0_10, %c0_11], %41 {strides = array<i32>} : memref<1x4x2x128xf32, #tpu.memory_space<vmem>>, vector<1x4x2x128xf32>,
    return
  }
  func.func @transform_0(%arg0: i32, %arg1: i32, %arg2: memref<4xf32, #tpu.memory_space<smem>>, %arg3: memref<1xf32, #tpu.memory_space<smem>>) -> (i32, i32, i32, i32) {
    %c0_i32 = arith.constant 0 : i32
    %c0_i32_0 = arith.constant 0 : i32
    %c0_i32_1 = arith.constant 0 : i32
    return %arg0, %c0_i32, %arg1, %c0_i32_0 : i32, i32, i32, i32
  }
  func.func @transform_1(%arg0: i32, %arg1: i32, %arg2: memref<4xf32, #tpu.memory_space<smem>>, %arg3: memref<1xf32, #tpu.memory_space<smem>>) -> (i32, i32, i32, i32) {
    %c0_i32 = arith.constant 0 : i32
    %c0_i32_0 = arith.constant 0 : i32
    %c0_i32_1 = arith.constant 0 : i32
    return %arg0, %c0_i32, %arg1, %c0_i32_0 : i32, i32, i32, i32
  }
  func.func @transform_2(%arg0: i32, %arg1: i32, %arg2: memref<4xf32, #tpu.memory_space<smem>>, %arg3: memref<1xf32, #tpu.memory_space<smem>>) -> (i32, i32, i32) {
    %c0_i32 = arith.constant 0 : i32
    %c0_i32_0 = arith.constant 0 : i32
    return %arg0, %arg1, %c0_i32 : i32, i32, i32
  }
}

</mosaic_0001>

<llo_original>
// kernel: tpu_custom_call.1
$region0: #{tpu_custom_call.1}
  #allocation0 [shape = 'u32[]', space=smem, size = 0x4, offset = 0x4, fixed_abs, tag = 'smem constant byte address 0x4 - core index']
  #allocation1 [shape = 'u32[144,128]{1,0:T(1,128)}', space=vmem, size = 0x12000, scoped, tag = 'internal scratch']
  #allocation2 [shape = 's32[1]{0}', space=sflag, size = 0x4, scoped, tag = 'scoped memory for tpu_custom_call.1']
  #allocation3 [shape = 'u8[512]{0}', space=smem, size = 0x200, scoped, tag = 'prefetched SMEM operand 0']
  #allocation4 [shape = 'f32[1]{0:T(128)S(6)}', space=smem, size = 0x200, scoped, tag = 'prefetched SMEM operand 1']
  %s0 = inlined_call_operand.vmem [shape: f32[4], index: 0, kind: input, shape index: {}]
  %s1 = inlined_call_operand.<no memory space> [shape: f32[1], index: 1, kind: input, shape index: {}]
  %s2 = inlined_call_operand.hbm [shape: f32[2,4,2,128], index: 2, kind: input, shape index: {}]
  %s3 = inlined_call_operand.hbm [shape: f32[2,4,2,128], index: 3, kind: output, shape index: {0}]
  %s4 = inlined_call_operand.hbm [shape: f32[2,2,128], index: 4, kind: output, shape index: {1}]
  %5 = xla_tuple %s3, %s4
  %s6 = sld [smem:[#allocation0]]
  $region49: #{tpu_custom_call.1} parent=0
    _
  %s8 = ssub.s32 1, %s6
  %s9 = scalar_select 0, %s8, %s6
  %s10 = sshll.u32 %s0, 4
  %s11 = int_to_ptr.vmem [resolvable:$true] %s10
  %13 = dma.vmem_to_smem %s11, 16, [#allocation3], [#allocation2]
  %14 = sst [smem:[#allocation4]] %s1
  %15 = dma.done [#allocation2], 16
  %16 = sfence
  $region1: #{tpu_custom_call.1} parent=0
    #allocation5 [shape = 'u8[8192]{0}', space=vmem, size = 0x2000, scoped, tag = 'input window, operand 2']
    #allocation6 [shape = 's32[2]{0}', space=sflag, size = 0x8, scoped, tag = 'scoped memory for tpu_custom_call.1']
    #allocation7 [shape = 's32[2]{0}', space=sflag, size = 0x8, scoped, tag = 'scoped memory for tpu_custom_call.1']
    #allocation8 [shape = 'u8[8192]{0}', space=vmem, size = 0x2000, scoped, tag = 'output window, operand 0']
    #allocation9 [shape = 'u8[2048]{0}', space=vmem, size = 0x800, scoped, tag = 'output window, operand 1']
    #allocation10 [shape = 's32[2]{0}', space=sflag, size = 0x8, scoped, tag = 'scoped memory for tpu_custom_call.1']
    %17 = vsyncpa [#allocation6], 0
    %s18 = scalar_lea.sflag [#allocation6], 1
    %19 = vsyncpa %s18, 0
    %20 = vsyncpa [#allocation7], 0
    %s21 = scalar_lea.sflag [#allocation7], 1
    %22 = vsyncpa %s21, 0
    %23 = vsyncpa [#allocation10], 0
    %s24 = scalar_lea.sflag [#allocation10], 1
    %25 = vsyncpa %s24, 0
    loop: start=0, step=1, limit=4
    $region2: #{tpu_custom_call.1} parent=1 // loop_pre_header
      _
    $region3: #{tpu_custom_call.1} parent=1 // loop_header
      %s27 = sphi 0, %s31
      %p28 = scmp.ge.s32.totalorder %s27, 4
      %s34 = sphi 0, %s46
      %s35 = sphi 0, %s42
      %s36 = sphi 0, %s34
      %s37 = sphi 0, %s35
      %s38 = sphi 0, %s36
      %s39 = sphi 0, %s37
      %s51 = sphi 0, %s53
      %s54 = sphi 0, %s51
      %s55 = sphi 0, %s54
      %s71 = sphi 0, %s55
      %s79 = sphi 0, %s81
      %s82 = sphi 0, %s79
      %s83 = sphi 0, %s82
      %s99 = sphi 0, %s83
      %s107 = sphi 0, %s109
      %s110 = sphi 0, %s107
      %s111 = sphi 0, %s110
      %s127 = sphi 0, %s111
    $region4: #{tpu_custom_call.1} parent=1 // loop_header_branch
      %30 = sbr.rel (%p28) target = $region8
    $region5: #{tpu_custom_call.1} parent=1 // loop_body
      %s32 = ssub.s32 %s27, 1
      %s33 = ssub.s32 %s27, 2
      %s40 = sadd.s32 1, %s35
      %p41 = scmp.ge.s32.totalorder %s40, 1
      %s42 = scalar_select %p41, 0, %s40
      %s43 = sadd.s32 1, %s34
      %s44 = scalar_select %p41, %s43, %s34
      %p45 = scmp.ge.s32.totalorder %s44, 2
      %s46 = scalar_select %p45, 0, %s44
      %s47 = ssub.s32 %s34, %s46
      %s48 = ssub.s32 %s35, %s42
      %s49 = sor.u32 %s47, %s48
      %p50 = scmp.eq.s32.totalorder %s49, 0
      %s52 = sadd.s32 %s51, 1
      %s53 = scalar_select %p50, %s51, %s52
      %p56 = pneg %p50
      %p57 = scmp.eq.s32.totalorder %s27, 1
      %p58 = por %p56, %p57
      %p59 = scmp.ne.s32.totalorder %s51, %s54
      %p60 = scmp.eq.s32.totalorder %s27, 0
      %p61 = por %p59, %p60
      %p62 = scmp.ne.s32.totalorder %s51, %s54
      %p63 = scmp.eq.s32.totalorder %s32, 1
      %p64 = por %p62, %p63
      %p65 = scmp.ne.s32.totalorder %s54, %s55
      %p66 = scmp.eq.s32.totalorder %s32, 0
      %p67 = por %p65, %p66
      %p68 = scmp.ne.s32.totalorder %s54, %s55
      %p69 = scmp.eq.s32.totalorder %s33, 1
      %p70 = por %p68, %p69
      %p72 = scmp.ne.s32.totalorder %s55, %s71
      %p73 = scmp.eq.s32.totalorder %s33, 0
      %p74 = por %p72, %p73
      %s75 = ssub.s32 %s34, %s46
      %s76 = ssub.s32 %s35, %s42
      %s77 = sor.u32 %s75, %s76
      %p78 = scmp.eq.s32.totalorder %s77, 0
      %s80 = sadd.s32 %s79, 1
      %s81 = scalar_select %p78, %s79, %s80
      %p84 = pneg %p78
      %p85 = scmp.eq.s32.totalorder %s27, 1
      %p86 = por %p84, %p85
      %p87 = scmp.ne.s32.totalorder %s79, %s82
      %p88 = scmp.eq.s32.totalorder %s27, 0
      %p89 = por %p87, %p88
      %p90 = scmp.ne.s32.totalorder %s79, %s82
      %p91 = scmp.eq.s32.totalorder %s32, 1
      %p92 = por %p90, %p91
      %p93 = scmp.ne.s32.totalorder %s82, %s83
      %p94 = scmp.eq.s32.totalorder %s32, 0
      %p95 = por %p93, %p94
      %p96 = scmp.ne.s32.totalorder %s82, %s83
      %p97 = scmp.eq.s32.totalorder %s33, 1
      %p98 = por %p96, %p97
      %p100 = scmp.ne.s32.totalorder %s83, %s99
      %p101 = scmp.eq.s32.totalorder %s33, 0
      %p102 = por %p100, %p101
      %s103 = ssub.s32 %s34, %s46
      %s104 = ssub.s32 %s35, %s42
      %s105 = sor.u32 %s103, %s104
      %p106 = scmp.eq.s32.totalorder %s105, 0
      %s108 = sadd.s32 %s107, 1
      %s109 = scalar_select %p106, %s107, %s108
      %p112 = pneg %p106
      %p113 = scmp.eq.s32.totalorder %s27, 1
      %p114 = por %p112, %p113
      %p115 = scmp.ne.s32.totalorder %s107, %s110
      %p116 = scmp.eq.s32.totalorder %s27, 0
      %p117 = por %p115, %p116
      %p118 = scmp.ne.s32.totalorder %s107, %s110
      %p119 = scmp.eq.s32.totalorder %s32, 1
      %p120 = por %p118, %p119
      %p121 = scmp.ne.s32.totalorder %s110, %s111
      %p122 = scmp.eq.s32.totalorder %s32, 0
      %p123 = por %p121, %p122
      %p124 = scmp.ne.s32.totalorder %s110, %s111
      %p125 = scmp.eq.s32.totalorder %s33, 1
      %p126 = por %p124, %p125
      %p128 = scmp.ne.s32.totalorder %s111, %s127
      %p129 = scmp.eq.s32.totalorder %s33, 0
      %p130 = por %p128, %p129
      %p131 = scmp.le.s32.totalorder 1, %s27
      %p132 = scmp.lt.s32.totalorder %s27, 3
      %p133 = pnand %p131, %p132
      %p134 = pneg %p133
      // Predicated region
      $region9: #{tpu_custom_call.1} parent=5 // pred_check
        _
      $region10: #{tpu_custom_call.1} parent=5 // pred_check_branch
        %136 = sbr.rel (%p133) target = $region12
      $region11: #{tpu_custom_call.1} parent=5 // pred_region
        %s137 = ssub.s32 %s27, 1
      $region12: #{tpu_custom_call.1} parent=5 // pred_fallthru
        _
      %p138 = scmp.lt.s32.totalorder %s27, 2
      // Predicated region
      $region13: #{tpu_custom_call.1} parent=5 // pred_check
        %p139 = pneg %p138
      $region14: #{tpu_custom_call.1} parent=5 // pred_check_branch
        %141 = sbr.rel (%p139) target = $region16
      $region15: #{tpu_custom_call.1} parent=5 // pred_region
        // Predicated region
        $region17: #{tpu_custom_call.1} parent=15 // pred_check
          %p142 = pneg %p61
        $region18: #{tpu_custom_call.1} parent=15 // pred_check_branch
          %144 = sbr.rel (%p142) target = $region20
        $region19: #{tpu_custom_call.1} parent=15 // pred_region
          %s145 = sand.u32 %s51, 1
          %s146 = scalar_lea.sflag [#allocation6], %s145
          %s147 = sand.u32 %s51, 1
          %s148 = smul.addr %s147, 8
          %s149 = scalar_lea.vmem [#allocation5], %s148
          %s151 = ssub.s32 128, 128
          %152 = vsyncadd %s146, %s151
          %s153 = smul.addr %s34, 4
          %s154 = sadd.s32 %s35, %s153
          %s155 = smul.addr %s154, 32
          %s156 = scalar_lea.hbm %s2, %s155
          %s157 = sshll.u32 %s149, 4
          %s158 = int_to_ptr.vmem [resolvable:$true] %s157
          %163 = dma.hbm_to_vmem [thread:$0]  %s156, 128, %s158, %s146, 32, 32, 2
        $region20: #{tpu_custom_call.1} parent=15 // pred_fallthru
          _
      $region16: #{tpu_custom_call.1} parent=5 // pred_fallthru
        _
      %p164 = scmp.le.s32.totalorder 1, %s27
      %p165 = scmp.lt.s32.totalorder %s27, 3
      %p166 = pnand %p164, %p165
      %p167 = pneg %p166
      // Predicated region
      $region21: #{tpu_custom_call.1} parent=5 // pred_check
        _
      $region22: #{tpu_custom_call.1} parent=5 // pred_check_branch
        %169 = sbr.rel (%p166) target = $region24
      $region23: #{tpu_custom_call.1} parent=5 // pred_region
        %s170 = ssub.s32 %s27, 1
        %s171 = sand.u32 %s54, 1
        %s172 = scalar_lea.sflag [#allocation6], %s171
        %s173 = sand.u32 %s54, 1
        %s174 = smul.addr %s173, 8
        %s175 = scalar_lea.vmem [#allocation5], %s174
        // Predicated region
        $region25: #{tpu_custom_call.1} parent=23 // pred_check
          %p176 = pneg %p67
        $region26: #{tpu_custom_call.1} parent=23 // pred_check_branch
          %178 = sbr.rel (%p176) target = $region28
        $region27: #{tpu_custom_call.1} parent=23 // pred_region
          %179 = dma.done %s172, 128
        $region28: #{tpu_custom_call.1} parent=23 // pred_fallthru
          _
        %s180 = sand.u32 %s54, 1
        %s181 = scalar_lea.sflag [#allocation6], %s180
        %s182 = sand.u32 %s54, 1
        %s183 = smul.addr %s182, 8
        %s184 = scalar_lea.vmem [#allocation5], %s183
        %p185 = pneg %p67
        %p186 = pneg %p64
        %p187 = pneg %p95
        %p188 = pneg %p92
        %s189 = sand.u32 %s82, 1
        %s190 = scalar_lea.sflag [#allocation7], %s189
        %s191 = sand.u32 %s82, 1
        %s192 = smul.addr %s191, 8
        %s193 = scalar_lea.vmem [#allocation8], %s192
        %p194 = pneg %p123
        %p195 = pneg %p120
        %s196 = sand.u32 %s110, 1
        %s197 = scalar_lea.sflag [#allocation10], %s196
        %s198 = sand.u32 %s110, 1
        %s199 = smul.addr %s198, 2
        %s200 = scalar_lea.vmem [#allocation9], %s199
        %v201 = vld [vmem:[%s175] sm:$0x3]
        %v202 = vld [vmem:[%s175 + $0x2] sm:$0x3]
        %v203 = vld [vmem:[%s175 + $0x4] sm:$0x3]
        %v204 = vld [vmem:[%s175 + $0x6] sm:$0x3]
        %s205 = sld [smem:[#allocation3]]
        %v206 = vstv %s205
        %v207 = vmul.f32 %v201, %v206
        %s208 = sld [smem:[#allocation3 + $0x1]]
        %v209 = vstv %s208
        %v210 = vmul.f32 %v202, %v209
        %v211 = vadd.f32 %v207, %v210
        %s212 = sld [smem:[#allocation3 + $0x2]]
        %v213 = vstv %s212
        %v214 = vmul.f32 %v203, %v213
        %v215 = vadd.f32 %v211, %v214
        %s216 = sld [smem:[#allocation3 + $0x3]]
        %v217 = vstv %s216
        %v218 = vmul.f32 %v204, %v217
        %v219 = vadd.f32 %v215, %v218
        %s220 = sld [smem:[#allocation4]]
        %v221 = vstv %s220
        %v222 = vadd.f32 %v219, %v221
        %v223 = vxor.u32 %v222, 2147483648
        %v224 = vmul.f32 %v223, 1.442695
        %v225 = vpow.pop %v224
        %v226 = vadd.f32 %v225, 1.0
        %v227 = vrcp.pop %v226
        %v228 = vmul.f32 1.0, %v227
        %229 = vst [vmem:[%s200] sm:$0x3] %v228
        %v230 = vmul.f32 %v201, %v228
        %v231 = vmul.f32 %v202, %v228
        %v232 = vmul.f32 %v203, %v228
        %v233 = vmul.f32 %v204, %v228
        %234 = vst [vmem:[%s193] sm:$0x3] %v230
        %235 = vst [vmem:[%s193 + $0x2] sm:$0x3] %v231
        %236 = vst [vmem:[%s193 + $0x4] sm:$0x3] %v232
        %237 = vst [vmem:[%s193 + $0x6] sm:$0x3] %v233
        %s238 = sand.u32 %s82, 1
        %s239 = scalar_lea.sflag [#allocation7], %s238
        %s240 = sand.u32 %s82, 1
        %s241 = smul.addr %s240, 8
        %s242 = scalar_lea.vmem [#allocation8], %s241
        %s243 = sand.u32 %s110, 1
        %s244 = scalar_lea.sflag [#allocation10], %s243
        %s245 = sand.u32 %s110, 1
        %s246 = smul.addr %s245, 2
        %s247 = scalar_lea.vmem [#allocation9], %s246
        // Predicated region
        $region29: #{tpu_custom_call.1} parent=23 // pred_check
          %p248 = pneg %p92
        $region30: #{tpu_custom_call.1} parent=23 // pred_check_branch
          %250 = sbr.rel (%p248) target = $region32
        $region31: #{tpu_custom_call.1} parent=23 // pred_region
          %s252 = ssub.s32 128, 128
          %253 = vsyncadd %s239, %s252
          %s254 = smul.addr %s36, 4
          %s255 = sadd.s32 %s37, %s254
          %s256 = smul.addr %s255, 32
          %s257 = scalar_lea.hbm %s3, %s256
          %s258 = sshll.u32 %s242, 4
          %s259 = int_to_ptr.vmem [resolvable:$true] %s258
          %264 = dma.vmem_to_hbm [thread:$0]  %s259, 128, %s257, %s239, 32, 32, 2
        $region32: #{tpu_custom_call.1} parent=23 // pred_fallthru
          _
        // Predicated region
        $region33: #{tpu_custom_call.1} parent=23 // pred_check
          %p265 = pneg %p120
        $region34: #{tpu_custom_call.1} parent=23 // pred_check_branch
          %267 = sbr.rel (%p265) target = $region36
        $region35: #{tpu_custom_call.1} parent=23 // pred_region
          %s269 = ssub.s32 32, 32
          %270 = vsyncadd %s244, %s269
          %s271 = sadd.s32 %s37, %s36
          %s272 = smul.addr %s271, 32
          %s273 = scalar_lea.hbm %s4, %s272
          %s275 = sshll.u32 %s247, 4
          %s276 = int_to_ptr.vmem [resolvable:$true] %s275
          %278 = dma.vmem_to_hbm [thread:$0]  %s276, 32, %s273, %s244
        $region36: #{tpu_custom_call.1} parent=23 // pred_fallthru
          _
      $region24: #{tpu_custom_call.1} parent=5 // pred_fallthru
        _
      %p279 = scmp.le.s32.totalorder 2, %s27
      // Predicated region
      $region37: #{tpu_custom_call.1} parent=5 // pred_check
        %p280 = pneg %p279
      $region38: #{tpu_custom_call.1} parent=5 // pred_check_branch
        %282 = sbr.rel (%p280) target = $region40
      $region39: #{tpu_custom_call.1} parent=5 // pred_region
        %s283 = ssub.s32 %s27, 2
        // Predicated region
        $region41: #{tpu_custom_call.1} parent=39 // pred_check
          %p284 = pneg %p98
        $region42: #{tpu_custom_call.1} parent=39 // pred_check_branch
          %286 = sbr.rel (%p284) target = $region44
        $region43: #{tpu_custom_call.1} parent=39 // pred_region
          %s287 = sand.u32 %s83, 1
          %s288 = scalar_lea.sflag [#allocation7], %s287
          %s289 = sand.u32 %s83, 1
          %s290 = smul.addr %s289, 8
          %s291 = scalar_lea.vmem [#allocation8], %s290
          %292 = dma.done %s288, 128
        $region44: #{tpu_custom_call.1} parent=39 // pred_fallthru
          _
        // Predicated region
        $region45: #{tpu_custom_call.1} parent=39 // pred_check
          %p293 = pneg %p126
        $region46: #{tpu_custom_call.1} parent=39 // pred_check_branch
          %295 = sbr.rel (%p293) target = $region48
        $region47: #{tpu_custom_call.1} parent=39 // pred_region
          %s296 = sand.u32 %s111, 1
          %s297 = scalar_lea.sflag [#allocation10], %s296
          %s298 = sand.u32 %s111, 1
          %s299 = smul.addr %s298, 2
          %s300 = scalar_lea.vmem [#allocation9], %s299
          %301 = dma.done %s297, 32
        $region48: #{tpu_custom_call.1} parent=39 // pred_fallthru
          _
      $region40: #{tpu_custom_call.1} parent=5 // pred_fallthru
        _
    $region6: #{tpu_custom_call.1} parent=1 // loop_footer
      %s31 = sadd.s32 1, %s27
    $region7: #{tpu_custom_call.1} parent=1 // loop_footer_branch
      %26 = sbr.rel target = $region3
    $region8: #{tpu_custom_call.1} parent=1 // loop_exit
      _
    %302 = vsyncpa [#allocation6], 1
    %s303 = scalar_lea.sflag [#allocation6], 1
    %304 = vsyncpa %s303, 1
    %305 = vsyncpa [#allocation7], 1
    %s306 = scalar_lea.sflag [#allocation7], 1
    %307 = vsyncpa %s306, 1
    %308 = vsyncpa [#allocation10], 1
    %s309 = scalar_lea.sflag [#allocation10], 1
    %310 = vsyncpa %s309, 1

</llo_original>
